<compile_context>
chip_gen: v6e
topology: v6e:2x2x1
jax: 0.10.0
libtpu: 0.0.40
codegen_flags: <defaults>
</compile_context>

<pallas_src>
import functools

import numpy as np
import jax
import jax.numpy as jnp
from jax.experimental import pallas as pl
from jax.experimental.pallas import tpu as pltpu


def _celu(v):
    # CELU(alpha=1): x if x > 0 else exp(x) - 1.  Kept in f32 on all
    # generations (v5e has no bf16 VPU/EUP path).
    return jnp.where(v > 0, v, jnp.exp(v) - 1.0)


def _mm(a, b, mm_dtype):
    # MXU matmul with selectable operand dtype and f32 accumulation.
    return jnp.dot(a.astype(mm_dtype), b.astype(mm_dtype),
                   preferred_element_type=jnp.float32)


def _round_up(n, m):
    return ((n + m - 1) // m) * m


# --------------------------------------------------------------------------
# Stage 1a: h0_act = celu(x @ e0w + e0b)
# Grid (j, k): j = h0 column tiles ("parallel", both TCs on v7x),
#              k = input_dim reduction tiles ("arbitrary", f32 accumulator).
# --------------------------------------------------------------------------
def _enc0_kernel(x_ref, e0w_ref, e0b_ref, h0_ref, acc_ref, *, mm_dtype):
    k = pl.program_id(1)

    @pl.when(k == 0)
    def _init():
        acc_ref[...] = jnp.zeros_like(acc_ref)

    acc_ref[...] += _mm(x_ref[...], e0w_ref[...], mm_dtype)

    @pl.when(k == pl.num_programs(1) - 1)
    def _finalize():
        h0_ref[...] = _celu(acc_ref[...] + e0b_ref[...])


# --------------------------------------------------------------------------
# Stage 1b (tiny, single invocation): encoder tail -> z, and the x-independent
# decoder chain w03 = d0w @ d1w @ d2w @ d3w (left-to-right, FLOP-optimal).
# --------------------------------------------------------------------------
def _enc_tail_w03_kernel(h0_ref, e1w, e1b, e2w, e2b, e3w, e3b, e4w, e4b,
                         d0w, d1w, d2w, d3w, z_ref, w03_ref, *, mm_dtype):
    # Dropout == identity (eval-mode semantics).
    h = _celu(_mm(h0_ref[...], e1w[...], mm_dtype) + e1b[...])
    h = _celu(_mm(h, e2w[...], mm_dtype) + e2b[...])
    h = _celu(_mm(h, e3w[...], mm_dtype) + e3b[...])
    z_ref[...] = _mm(h, e4w[...], mm_dtype) + e4b[...]

    w01 = _mm(d0w[...], d1w[...], mm_dtype)
    w02 = _mm(w01, d2w[...], mm_dtype)
    w03_ref[...] = _mm(w02, d3w[...], mm_dtype)


# --------------------------------------------------------------------------
# Stage 2: per column tile j of input_dim:
#   atlas[:, j] = relu(w03 @ d4w[:, j]);   x_recon[:, j] = z @ atlas[:, j]
# --------------------------------------------------------------------------
def _atlas_recon_kernel(w03_ref, z_ref, d4w_ref, atlas_ref, xrec_ref, *, mm_dtype):
    atlas = jnp.maximum(_mm(w03_ref[...], d4w_ref[...], mm_dtype), 0.0)
    atlas_ref[...] = atlas
    xrec_ref[...] = _mm(z_ref[...], atlas, mm_dtype)


# --------------------------------------------------------------------------
# One-time parameter preparation (hoists padding / casting of the big weights
# out of the per-call path).
# --------------------------------------------------------------------------
def prepare_oncoder_params(enc_params, dec_weights, *, k_tile=1024, n_tile=1024,
                           h_tile=256, weight_dtype=jnp.bfloat16):
    """enc_params: list of (W_io, b_1o). dec_weights: list of W_io (= torch weight.T).

    weight_dtype: storage/MXU dtype of the streamed weights and matmul operands
      (bf16 recommended; f32 is the tight-tolerance path).  Accumulation and
      all outputs are f32.
    h_tile: stage-1 output-column split (128/256/512).  256 exposes a parallel
      axis for v7x's two TensorCores; 512 avoids re-streaming x on v5e/v6e when
      the batch is very large.
    """
    f32 = jnp.float32
    e0w, e0b = enc_params[0]
    input_dim, h0 = e0w.shape
    output_dim = enc_params[-1][0].shape[1]
    h_last = dec_weights[-1].shape[0]
    assert dec_weights[-1].shape[1] == input_dim
    assert h0 % h_tile == 0 and h_tile % 128 == 0

    k_tile = min(k_tile, _round_up(input_dim, 128))
    n_tile = min(n_tile, _round_up(input_dim, 128))
    dk = _round_up(input_dim, k_tile)
    dn = _round_up(input_dim, n_tile)

    # Pad + cast the two large streamed weights once (zero rows/cols contribute
    # exactly zero; padded atlas / x_recon columns come out exactly zero).
    e0w_p = jnp.pad(e0w.astype(weight_dtype), ((0, dk - input_dim), (0, 0)))
    d4w_p = jnp.pad(dec_weights[-1].astype(weight_dtype), ((0, 0), (0, dn - input_dim)))

    tail = []
    for W, b in enc_params[1:]:
        tail += [W.astype(f32), b.astype(f32)]
    tail += [w.astype(f32) for w in dec_weights[:-1]]       # d0w..d3w

    return dict(
        input_dim=input_dim, output_dim=output_dim, h0=h0, h_last=h_last,
        k_tile=k_tile, n_tile=n_tile, h_tile=h_tile, dk=dk, dn=dn,
        mm_dtype=weight_dtype,
        e0w_p=e0w_p, d4w_p=d4w_p, e0b=e0b.astype(f32), tail=tail,
    )


def oncoder_forward(x, params, *, trim_outputs=True):
    """x: (B, input_dim) f32 -> (x_recon, z, methyatlas), all f32."""
    p = params
    f32 = jnp.float32
    mm_dtype = p["mm_dtype"]
    input_dim, output_dim = p["input_dim"], p["output_dim"]
    h0, h_last = p["h0"], p["h_last"]
    k_tile, n_tile, h_tile = p["k_tile"], p["n_tile"], p["h_tile"]
    dk, dn = p["dk"], p["dn"]

    B = x.shape[0]
    assert x.shape[1] == input_dim
    x = x.astype(f32)
    if dk != input_dim:
        # Cheap relative to the weight streams; very-large-B callers can
        # pre-pad x themselves to skip this copy entirely.
        x = jnp.pad(x, ((0, 0), (0, dk - input_dim)))

    n_h = h0 // h_tile
    n_k = dk // k_tile
    wbytes = p["e0w_p"].dtype.itemsize

    # ---------------- stage 1a: first (large) encoder layer ----------------
    flops1 = 2 * B * dk * h0
    bytes1 = 4 * B * dk * n_h + wbytes * dk * h0 + 4 * (B * h0 + h0)
    h0_act = pl.pallas_call(
        functools.partial(_enc0_kernel, mm_dtype=mm_dtype),
        out_shape=jax.ShapeDtypeStruct((B, h0), f32),
        grid_spec=pltpu.PrefetchScalarGridSpec(
            num_scalar_prefetch=0,
            grid=(n_h, n_k),
            in_specs=[
                pl.BlockSpec((B, k_tile), lambda j, k: (0, k)),      # x col tile
                pl.BlockSpec((k_tile, h_tile), lambda j, k: (k, j)), # e0w tile
                pl.BlockSpec((1, h_tile), lambda j, k: (0, j)),      # e0b tile
            ],
            out_specs=pl.BlockSpec((B, h_tile), lambda j, k: (0, j)),
            scratch_shapes=[pltpu.VMEM((B, h_tile), f32)],
        ),
        compiler_params=pltpu.CompilerParams(
            dimension_semantics=("parallel", "arbitrary")),
        cost_estimate=pl.CostEstimate(flops=int(flops1),
                                      transcendentals=int(B * h0),
                                      bytes_accessed=int(bytes1)),
    )(x, p["e0w_p"], p["e0b"])

    # ---------------- stage 1b: encoder tail + w03 (tiny) ----------------
    z, w03 = pl.pallas_call(
        functools.partial(_enc_tail_w03_kernel, mm_dtype=mm_dtype),
        out_shape=(jax.ShapeDtypeStruct((B, output_dim), f32),
                   jax.ShapeDtypeStruct((output_dim, h_last), f32)),
    )(h0_act, *p["tail"])

    # ---------------- stage 2: atlas + reconstruction ----------------
    n_n = dn // n_tile
    flops2 = 2 * (output_dim * h_last * dn + B * output_dim * dn)
    bytes2 = (4 * (output_dim * h_last + B * output_dim)
              + wbytes * h_last * dn + 4 * (output_dim * dn + B * dn))
    atlas_p, xrec_p = pl.pallas_call(
        functools.partial(_atlas_recon_kernel, mm_dtype=mm_dtype),
        out_shape=(jax.ShapeDtypeStruct((output_dim, dn), f32),
                   jax.ShapeDtypeStruct((B, dn), f32)),
        grid_spec=pltpu.PrefetchScalarGridSpec(
            num_scalar_prefetch=0,
            grid=(n_n,),
            in_specs=[
                pl.BlockSpec((output_dim, h_last), lambda j: (0, 0)),  # w03 (resident)
                pl.BlockSpec((B, output_dim), lambda j: (0, 0)),       # z   (resident)
                pl.BlockSpec((h_last, n_tile), lambda j: (0, j)),      # d4w col tile
            ],
            out_specs=[pl.BlockSpec((output_dim, n_tile), lambda j: (0, j)),
                       pl.BlockSpec((B, n_tile), lambda j: (0, j))],
        ),
        compiler_params=pltpu.CompilerParams(
            dimension_semantics=("parallel",)),   # independent tiles -> megacore
        cost_estimate=pl.CostEstimate(flops=int(flops2), transcendentals=0,
                                      bytes_accessed=int(bytes2)),
    )(w03, z, p["d4w_p"])

    if trim_outputs and dn != input_dim:
        # Padding columns are exactly zero; set trim_outputs=False to let
        # downstream consume the padded arrays and skip this HBM copy.
        atlas_p = atlas_p[:, :input_dim]
        xrec_p = xrec_p[:, :input_dim]
    return xrec_p, z, atlas_p


# ----------------------- deterministic parameter init -----------------------
def init_linear(key, in_f, out_f, bias=True):
    """PyTorch-style uniform init; returns W in (in_f, out_f) layout, b as (1, out_f)."""
    kw, kb = jax.random.split(key)
    bound = 1.0 / np.sqrt(in_f)
    W = jax.random.uniform(kw, (out_f, in_f), jnp.float32, -bound, bound)  # torch layout
    W_io = W.T
    if bias:
        b = jax.random.uniform(kb, (1, out_f), jnp.float32, -bound, bound)
        return W_io, b
    return W_io, None


def build_params(key, input_dim, output_dim):
    keys = jax.random.split(key, 10)
    enc_dims = [(input_dim, 512), (512, 256), (256, 128), (128, 64), (64, output_dim)]
    enc_params = [init_linear(keys[i], di, do, bias=True)
                  for i, (di, do) in enumerate(enc_dims)]
    dec_dims = [(output_dim, 64), (64, 128), (128, 256), (256, 512), (512, input_dim)]
    # decoder[i].weight has shape (out, in); methyatlas uses weight.T = (in, out).
    dec_weights = [init_linear(keys[5 + i], di, do, bias=False)[0]
                   for i, (di, do) in enumerate(dec_dims)]
    return enc_params, dec_weights


def reference_forward(x, enc_params, dec_weights):
    """Pure-JAX reference mirroring the PyTorch forward (eval-mode dropout)."""
    celu = lambda v: jnp.where(v > 0, v, jnp.exp(v) - 1.0)
    atlas = dec_weights[0]
    for W in dec_weights[1:]:
        atlas = atlas @ W
    atlas = jnp.maximum(atlas, 0.0)
    h = x
    for i, (W, b) in enumerate(enc_params):
        h = h @ W + b
        if i < len(enc_params) - 1:
            h = celu(h)
    z = h
    return z @ atlas, z, atlas


if __name__ == "__main__":
    # NOTE: for production throughput, batch B toward 128 (v5e) / 256 (v6e, v7x)
    # so the MXU rows fill; shapes here are kept small for the smoke test.
    B, INPUT_DIM, OUTPUT_DIM = 8, 1024, 16

    key = jax.random.PRNGKey(0)
    k_x, k_p, k_x2, k_p2 = jax.random.split(key, 4)
    x = jax.random.normal(k_x, (B, INPUT_DIM), jnp.float32)
    enc_params, dec_weights = build_params(k_p, INPUT_DIM, OUTPUT_DIM)
    r_recon, r_z, r_atlas = reference_forward(x, enc_params, dec_weights)

    # ---- f32 weight stream / MXU operands (works everywhere, tight tolerance) ----
    params_f32 = prepare_oncoder_params(enc_params, dec_weights,
                                        weight_dtype=jnp.float32)
    x_recon, z, atlas = oncoder_forward(x, params_f32)
    jax.block_until_ready((x_recon, z, atlas))
    np.testing.assert_allclose(np.asarray(atlas), np.asarray(r_atlas), rtol=1e-4, atol=1e-5)
    np.testing.assert_allclose(np.asarray(z), np.asarray(r_z), rtol=1e-4, atol=1e-5)
    np.testing.assert_allclose(np.asarray(x_recon), np.asarray(r_recon), rtol=1e-3, atol=1e-4)

    # ---- bf16 weight stream (default; halves dominant HBM traffic; f32 accumulation) ----
    params_bf16 = prepare_oncoder_params(enc_params, dec_weights)   # bf16 default
    xb_recon, zb, atlasb = oncoder_forward(x, params_bf16)
    jax.block_until_ready((xb_recon, zb, atlasb))
    np.testing.assert_allclose(np.asarray(atlasb), np.asarray(r_atlas), rtol=5e-2, atol=5e-3)
    np.testing.assert_allclose(np.asarray(zb), np.asarray(r_z), rtol=5e-2, atol=5e-3)
    np.testing.assert_allclose(np.asarray(xb_recon), np.asarray(r_recon), rtol=5e-2, atol=5e-3)

    # ---- non-tile-multiple input_dim (padding + trim path) + odd batch ----
    B2, IN2 = 4, 320
    x2 = jax.random.normal(k_x2, (B2, IN2), jnp.float32)
    enc2, dec2 = build_params(k_p2, IN2, OUTPUT_DIM)
    params2 = prepare_oncoder_params(enc2, dec2, k_tile=256, n_tile=256,
                                     h_tile=512, weight_dtype=jnp.float32)
    xr2, z2, at2 = oncoder_forward(x2, params2)
    jax.block_until_ready((xr2, z2, at2))
    rr2, rz2, ra2 = reference_forward(x2, enc2, dec2)
    np.testing.assert_allclose(np.asarray(at2), np.asarray(ra2), rtol=1e-4, atol=1e-5)
    np.testing.assert_allclose(np.asarray(z2), np.asarray(rz2), rtol=1e-4, atol=1e-5)
    np.testing.assert_allclose(np.asarray(xr2), np.asarray(rr2), rtol=1e-3, atol=1e-4)

    print("KERNEL_OK")
</pallas_src>

<mosaic_0001>
module attributes {stable_mosaic.version = 11 : i64} {
  func.func @_enc0_kernel(%arg0: i32, %arg1: i32, %arg2: memref<8x1024xf32, #tpu.memory_space<vmem>>, %arg3: memref<1024x256xf32, #tpu.memory_space<vmem>>, %arg4: memref<1x256xf32, #tpu.memory_space<vmem>>, %arg5: memref<8x256xf32, #tpu.memory_space<vmem>>, %arg6: memref<8x256xf32, #tpu.memory_space<vmem>>) attributes {dimension_semantics = [#tpu.dimension_semantics<parallel>, #tpu.dimension_semantics<arbitrary>], iteration_bounds = array<i64: 2, 1>, scalar_prefetch = 0 : i64, scratch_operands = 1 : i64, tpu.core_type = #tpu.core_type<tc>, window_params = [{transform_indices = @transform_0, window_bounds = array<i64: 8, 1024>}, {transform_indices = @transform_1, window_bounds = array<i64: 1024, 256>}, {transform_indices = @transform_2, window_bounds = array<i64: 1, 256>}, {transform_indices = @transform_3, window_bounds = array<i64: 8, 256>}]} {
    %c0_i32 = arith.constant 0 : i32
    %0 = arith.cmpi eq, %arg1, %c0_i32 : i32
    %1 = arith.extui %0 : i1 to i32
    %c0_i32_0 = arith.constant 0 : i32
    %2 = arith.cmpi ne, %1, %c0_i32_0 : i32
    scf.if %2 {
      %cst_10 = arith.constant 0.000000e+00 : f32
      %12 = vector.broadcast %cst_10 : f32 to vector<8x256xf32>
      %c0_11 = arith.constant 0 : index
      %c0_12 = arith.constant 0 : index
      %13 = vector.load %arg6[%c0_11, %c0_12] : memref<8x256xf32, #tpu.memory_space<vmem>>, vector<8x256xf32>
      tpu.vector_store %arg6[%c0_11, %c0_12], %12 {strides = array<i32>} : memref<8x256xf32, #tpu.memory_space<vmem>>, vector<8x256xf32>,
    } else {
    }
    %c0 = arith.constant 0 : index
    %c0_1 = arith.constant 0 : index
    %3 = vector.load %arg6[%c0, %c0_1] : memref<8x256xf32, #tpu.memory_space<vmem>>, vector<8x256xf32>
    %c0_2 = arith.constant 0 : index
    %c0_3 = arith.constant 0 : index
    %4 = vector.load %arg2[%c0_2, %c0_3] : memref<8x1024xf32, #tpu.memory_space<vmem>>, vector<8x1024xf32>
    %c0_4 = arith.constant 0 : index
    %c0_5 = arith.constant 0 : index
    %5 = vector.load %arg3[%c0_4, %c0_5] : memref<1024x256xf32, #tpu.memory_space<vmem>>, vector<1024x256xf32>
    %cst = arith.constant dense<0.000000e+00> : vector<8x256xf32>
    %6 = tpu.matmul %4, %5, %cst {dimension_numbers = #tpu.dot_dimension_numbers<[1], [0], [0], [1], [0, 0, 1, 1], [], []>} : vector<8x1024xf32>, vector<1024x256xf32>, vector<8x256xf32> -> vector<8x256xf32>
    %7 = arith.addf %3, %6 : vector<8x256xf32>
    %c0_6 = arith.constant 0 : index
    %c0_7 = arith.constant 0 : index
    %8 = vector.load %arg6[%c0_6, %c0_7] : memref<8x256xf32, #tpu.memory_space<vmem>>, vector<8x256xf32>
    tpu.vector_store %arg6[%c0_6, %c0_7], %7 {strides = array<i32>} : memref<8x256xf32, #tpu.memory_space<vmem>>, vector<8x256xf32>,
    %c0_i32_8 = arith.constant 0 : i32
    %9 = arith.cmpi eq, %arg1, %c0_i32_8 : i32
    %10 = arith.extui %9 : i1 to i32
    %c0_i32_9 = arith.constant 0 : i32
    %11 = arith.cmpi ne, %10, %c0_i32_9 : i32
    scf.if %11 {
      %c0_10 = arith.constant 0 : index
      %c0_11 = arith.constant 0 : index
      %12 = vector.load %arg6[%c0_10, %c0_11] : memref<8x256xf32, #tpu.memory_space<vmem>>, vector<8x256xf32>
      %c0_12 = arith.constant 0 : index
      %c0_13 = arith.constant 0 : index
      %13 = vector.load %arg4[%c0_12, %c0_13] : memref<1x256xf32, #tpu.memory_space<vmem>>, vector<1x256xf32>
      %14 = vector.broadcast %13 : vector<1x256xf32> to vector<8x256xf32>
      %15 = arith.addf %12, %14 : vector<8x256xf32>
      %cst_14 = arith.constant 0.000000e+00 : f32
      %16 = vector.broadcast %cst_14 : f32 to vector<8x256xf32>
      %17 = arith.cmpf ogt, %15, %16 : vector<8x256xf32>
      %18 = math.exp %15 : vector<8x256xf32>
      %cst_15 = arith.constant 1.000000e+00 : f32
      %19 = vector.broadcast %cst_15 : f32 to vector<8x256xf32>
      %20 = arith.subf %18, %19 : vector<8x256xf32>
      %21 = arith.select %17, %15, %20 : vector<8x256xi1>, vector<8x256xf32>
      %c0_16 = arith.constant 0 : index
      %c0_17 = arith.constant 0 : index
      %22 = vector.load %arg5[%c0_16, %c0_17] : memref<8x256xf32, #tpu.memory_space<vmem>>, vector<8x256xf32>
      tpu.vector_store %arg5[%c0_16, %c0_17], %21 {strides = array<i32>} : memref<8x256xf32, #tpu.memory_space<vmem>>, vector<8x256xf32>,
    } else {
    }
    return
  }
  func.func @transform_0(%arg0: i32, %arg1: i32) -> (i32, i32) {
    %c0_i32 = arith.constant 0 : i32
    %c0_i32_0 = arith.constant 0 : i32
    return %c0_i32, %arg1 : i32, i32
  }
  func.func @transform_1(%arg0: i32, %arg1: i32) -> (i32, i32) {
    %c0_i32 = arith.constant 0 : i32
    return %arg1, %arg0 : i32, i32
  }
  func.func @transform_2(%arg0: i32, %arg1: i32) -> (i32, i32) {
    %c0_i32 = arith.constant 0 : i32
    %c0_i32_0 = arith.constant 0 : i32
    return %c0_i32, %arg0 : i32, i32
  }
  func.func @transform_3(%arg0: i32, %arg1: i32) -> (i32, i32) {
    %c0_i32 = arith.constant 0 : i32
    %c0_i32_0 = arith.constant 0 : i32
    return %c0_i32, %arg0 : i32, i32
  }
}

</mosaic_0001>

<llo_original>
// kernel: tpu_custom_call.1
$region0: #{tpu_custom_call.1}
  #allocation0 [shape = 'u32[]', space=smem, size = 0x4, offset = 0x4, fixed_abs, tag = 'smem constant byte address 0x4 - core index']
  #allocation1 [shape = 'u32[144,128]{1,0:T(1,128)}', space=vmem, size = 0x12000, scoped, tag = 'internal scratch']
  #allocation2 [shape = 'f32[8,256]{1,0:T(8,128)}', space=vmem, size = 0x2000, scoped, tag = 'scratch operand']
  %s0 = inlined_call_operand.hbm [shape: f32[8,1024], index: 0, kind: input, shape index: {}]
  %s1 = inlined_call_operand.hbm [shape: f32[1024,512], index: 1, kind: input, shape index: {}]
  %s2 = inlined_call_operand.hbm [shape: f32[1,512], index: 2, kind: input, shape index: {}]
  %s3 = inlined_call_operand.hbm [shape: f32[8,512], index: 3, kind: output, shape index: {}]
  %s4 = sld [smem:[#allocation0]]
  $region65: #{tpu_custom_call.1} parent=0
    _
  %s6 = ssub.s32 1, %s4
  %s7 = scalar_select 0, %s6, %s4
  $region1: #{tpu_custom_call.1} parent=0
    #allocation3 [shape = 'u8[32768]{0}', space=vmem, size = 0x8000, scoped, tag = 'input window, operand 0, single buffered']
    #allocation4 [shape = 's32[2]{0}', space=sflag, size = 0x8, scoped, tag = 'scoped memory for tpu_custom_call.1']
    #allocation5 [shape = 's32[2]{0}', space=sflag, size = 0x8, scoped, tag = 'scoped memory for tpu_custom_call.1']
    #allocation6 [shape = 'u8[2097152]{0}', space=vmem, size = 0x200000, scoped, tag = 'input window, operand 1']
    #allocation7 [shape = 's32[2]{0}', space=sflag, size = 0x8, scoped, tag = 'scoped memory for tpu_custom_call.1']
    #allocation8 [shape = 'u8[2048]{0}', space=vmem, size = 0x800, scoped, tag = 'input window, operand 2']
    #allocation9 [shape = 'u8[16384]{0}', space=vmem, size = 0x4000, scoped, tag = 'output window, operand 0']
    %8 = vsyncpa [#allocation4], 0
    %9 = vsyncpa [#allocation7], 0
    %s10 = scalar_lea.sflag [#allocation7], 1
    %11 = vsyncpa %s10, 0
    %12 = vsyncpa [#allocation5], 0
    %s13 = scalar_lea.sflag [#allocation5], 1
    %14 = vsyncpa %s13, 0
    loop: start=0, step=1, limit=4
    $region2: #{tpu_custom_call.1} parent=1 // loop_pre_header
      _
    $region3: #{tpu_custom_call.1} parent=1 // loop_header
      %s16 = sphi 0, %s20
      %p17 = scmp.ge.s32.totalorder %s16, 4
      %s23 = sphi 0, %s35
      %s24 = sphi 0, %s31
      %s25 = sphi 0, %s23
      %s26 = sphi 0, %s24
      %s27 = sphi 0, %s25
      %s28 = sphi 0, %s26
      %s38 = sphi 0, %s40
      %s41 = sphi 0, %s38
      %s42 = sphi 0, %s41
      %s58 = sphi 0, %s42
      %s66 = sphi 0, %s68
      %s69 = sphi 0, %s66
      %s70 = sphi 0, %s69
      %s86 = sphi 0, %s70
      %s92 = sphi 0, %s94
      %s95 = sphi 0, %s92
      %s96 = sphi 0, %s95
      %s112 = sphi 0, %s96
      %s118 = sphi 0, %s120
      %s121 = sphi 0, %s118
      %s122 = sphi 0, %s121
      %s138 = sphi 0, %s122
    $region4: #{tpu_custom_call.1} parent=1 // loop_header_branch
      %19 = sbr.rel (%p17) target = $region8
    $region5: #{tpu_custom_call.1} parent=1 // loop_body
      %s21 = ssub.s32 %s16, 1
      %s22 = ssub.s32 %s16, 2
      %s29 = sadd.s32 1, %s24
      %p30 = scmp.ge.s32.totalorder %s29, 1
      %s31 = scalar_select %p30, 0, %s29
      %s32 = sadd.s32 1, %s23
      %s33 = scalar_select %p30, %s32, %s23
      %p34 = scmp.ge.s32.totalorder %s33, 2
      %s35 = scalar_select %p34, 0, %s33
      %s36 = ssub.s32 %s24, %s31
      %p37 = scmp.eq.s32.totalorder %s36, 0
      %s39 = sadd.s32 %s38, 1
      %s40 = scalar_select %p37, %s38, %s39
      %p43 = pneg %p37
      %p44 = scmp.eq.s32.totalorder %s16, 1
      %p45 = por %p43, %p44
      %p46 = scmp.ne.s32.totalorder %s38, %s41
      %p47 = scmp.eq.s32.totalorder %s16, 0
      %p48 = por %p46, %p47
      %p49 = scmp.ne.s32.totalorder %s38, %s41
      %p50 = scmp.eq.s32.totalorder %s21, 1
      %p51 = por %p49, %p50
      %p52 = scmp.ne.s32.totalorder %s41, %s42
      %p53 = scmp.eq.s32.totalorder %s21, 0
      %p54 = por %p52, %p53
      %p55 = scmp.ne.s32.totalorder %s41, %s42
      %p56 = scmp.eq.s32.totalorder %s22, 1
      %p57 = por %p55, %p56
      %p59 = scmp.ne.s32.totalorder %s42, %s58
      %p60 = scmp.eq.s32.totalorder %s22, 0
      %p61 = por %p59, %p60
      %s62 = ssub.s32 %s24, %s31
      %s63 = ssub.s32 %s23, %s35
      %s64 = sor.u32 %s62, %s63
      %p65 = scmp.eq.s32.totalorder %s64, 0
      %s67 = sadd.s32 %s66, 1
      %s68 = scalar_select %p65, %s66, %s67
      %p71 = pneg %p65
      %p72 = scmp.eq.s32.totalorder %s16, 1
      %p73 = por %p71, %p72
      %p74 = scmp.ne.s32.totalorder %s66, %s69
      %p75 = scmp.eq.s32.totalorder %s16, 0
      %p76 = por %p74, %p75
      %p77 = scmp.ne.s32.totalorder %s66, %s69
      %p78 = scmp.eq.s32.totalorder %s21, 1
      %p79 = por %p77, %p78
      %p80 = scmp.ne.s32.totalorder %s69, %s70
      %p81 = scmp.eq.s32.totalorder %s21, 0
      %p82 = por %p80, %p81
      %p83 = scmp.ne.s32.totalorder %s69, %s70
      %p84 = scmp.eq.s32.totalorder %s22, 1
      %p85 = por %p83, %p84
      %p87 = scmp.ne.s32.totalorder %s70, %s86
      %p88 = scmp.eq.s32.totalorder %s22, 0
      %p89 = por %p87, %p88
      %s90 = ssub.s32 %s23, %s35
      %p91 = scmp.eq.s32.totalorder %s90, 0
      %s93 = sadd.s32 %s92, 1
      %s94 = scalar_select %p91, %s92, %s93
      %p97 = pneg %p91
      %p98 = scmp.eq.s32.totalorder %s16, 1
      %p99 = por %p97, %p98
      %p100 = scmp.ne.s32.totalorder %s92, %s95
      %p101 = scmp.eq.s32.totalorder %s16, 0
      %p102 = por %p100, %p101
      %p103 = scmp.ne.s32.totalorder %s92, %s95
      %p104 = scmp.eq.s32.totalorder %s21, 1
      %p105 = por %p103, %p104
      %p106 = scmp.ne.s32.totalorder %s95, %s96
      %p107 = scmp.eq.s32.totalorder %s21, 0
      %p108 = por %p106, %p107
      %p109 = scmp.ne.s32.totalorder %s95, %s96
      %p110 = scmp.eq.s32.totalorder %s22, 1
      %p111 = por %p109, %p110
      %p113 = scmp.ne.s32.totalorder %s96, %s112
      %p114 = scmp.eq.s32.totalorder %s22, 0
      %p115 = por %p113, %p114
      %s116 = ssub.s32 %s23, %s35
      %p117 = scmp.eq.s32.totalorder %s116, 0
      %s119 = sadd.s32 %s118, 1
      %s120 = scalar_select %p117, %s118, %s119
      %p123 = pneg %p117
      %p124 = scmp.eq.s32.totalorder %s16, 1
      %p125 = por %p123, %p124
      %p126 = scmp.ne.s32.totalorder %s118, %s121
      %p127 = scmp.eq.s32.totalorder %s16, 0
      %p128 = por %p126, %p127
      %p129 = scmp.ne.s32.totalorder %s118, %s121
      %p130 = scmp.eq.s32.totalorder %s21, 1
      %p131 = por %p129, %p130
      %p132 = scmp.ne.s32.totalorder %s121, %s122
      %p133 = scmp.eq.s32.totalorder %s21, 0
      %p134 = por %p132, %p133
      %p135 = scmp.ne.s32.totalorder %s121, %s122
      %p136 = scmp.eq.s32.totalorder %s22, 1
      %p137 = por %p135, %p136
      %p139 = scmp.ne.s32.totalorder %s122, %s138
      %p140 = scmp.eq.s32.totalorder %s22, 0
      %p141 = por %p139, %p140
      %p142 = scmp.le.s32.totalorder 1, %s16
      %p143 = scmp.lt.s32.totalorder %s16, 3
      %p144 = pnand %p142, %p143
      %p145 = pneg %p144
      // Predicated region
      $region9: #{tpu_custom_call.1} parent=5 // pred_check
        _
      $region10: #{tpu_custom_call.1} parent=5 // pred_check_branch
        %147 = sbr.rel (%p144) target = $region12
      $region11: #{tpu_custom_call.1} parent=5 // pred_region
        %s148 = ssub.s32 %s16, 1
        // Predicated region
        $region13: #{tpu_custom_call.1} parent=11 // pred_check
          %p149 = pneg %p54
        $region14: #{tpu_custom_call.1} parent=11 // pred_check_branch
          %151 = sbr.rel (%p149) target = $region16
        $region15: #{tpu_custom_call.1} parent=11 // pred_region
          %s152 = smul.u32 8, %s26
          %s154 = ssub.s32 1024, 1024
          %155 = vsyncadd [#allocation4], %s154
          %s156 = smul.addr %s152, 128
          %s157 = scalar_lea.hbm %s0, %s156
          %s159 = sshll.u32 [#allocation3], 4
          %s160 = int_to_ptr.vmem [resolvable:$true] %s159
          %162 = dma.hbm_to_vmem [thread:$0]  %s157, 1024, %s160, [#allocation4]
        $region16: #{tpu_custom_call.1} parent=11 // pred_fallthru
          _
      $region12: #{tpu_custom_call.1} parent=5 // pred_fallthru
        _
      %p163 = scmp.lt.s32.totalorder %s16, 2
      // Predicated region
      $region17: #{tpu_custom_call.1} parent=5 // pred_check
        %p164 = pneg %p163
      $region18: #{tpu_custom_call.1} parent=5 // pred_check_branch
        %166 = sbr.rel (%p164) target = $region20
      $region19: #{tpu_custom_call.1} parent=5 // pred_region
        // Predicated region
        $region21: #{tpu_custom_call.1} parent=19 // pred_check
          %p167 = pneg %p76
        $region22: #{tpu_custom_call.1} parent=19 // pred_check_branch
          %169 = sbr.rel (%p167) target = $region24
        $region23: #{tpu_custom_call.1} parent=19 // pred_region
          %s170 = sand.u32 %s16, 1
          %s171 = scalar_lea.sflag [#allocation7], %s170
          %s172 = sand.u32 %s66, 1
          %s173 = smul.addr %s172, 2048
          %s174 = scalar_lea.vmem [#allocation6], %s173
          %s175 = smul.u32 128, %s24
          %s176 = smul.u32 2, %s23
          %s178 = ssub.s32 32768, 32768
          %179 = vsyncadd %s171, %s178
          %s180 = smul.addr %s175, 4
          %s181 = sadd.s32 %s176, %s180
          %s182 = smul.addr %s181, 128
          %s183 = scalar_lea.hbm %s1, %s182
          %s184 = sshll.u32 %s174, 4
          %s185 = int_to_ptr.vmem [resolvable:$true] %s184
          %190 = dma.hbm_to_vmem [thread:$0]  %s183, 32768, %s185, %s171, 512, 256, 16
        $region24: #{tpu_custom_call.1} parent=19 // pred_fallthru
          _
        // Predicated region
        $region25: #{tpu_custom_call.1} parent=19 // pred_check
          %p191 = pneg %p102
        $region26: #{tpu_custom_call.1} parent=19 // pred_check_branch
          %193 = sbr.rel (%p191) target = $region28
        $region27: #{tpu_custom_call.1} parent=19 // pred_region
          %s194 = sand.u32 %s16, 1
          %s195 = scalar_lea.sflag [#allocation7], %s194
          %s196 = sand.u32 %s92, 1
          %s197 = smul.addr %s196, 2
          %s198 = scalar_lea.vmem [#allocation8], %s197
          %s199 = smul.u32 2, %s23
          %s201 = ssub.s32 32, 32
          %202 = vsyncadd %s195, %s201
          %s203 = smul.addr %s199, 16
          %s204 = scalar_lea.hbm %s2, %s203
          %s206 = sshll.u32 %s198, 4
          %s207 = int_to_ptr.vmem [resolvable:$true] %s206
          %209 = dma.hbm_to_vmem [thread:$0]  %s204, 32, %s207, %s195
        $region28: #{tpu_custom_call.1} parent=19 // pred_fallthru
          _
      $region20: #{tpu_custom_call.1} parent=5 // pred_fallthru
        _
      %p210 = scmp.le.s32.totalorder 1, %s16
      %p211 = scmp.lt.s32.totalorder %s16, 3
      %p212 = pnand %p210, %p211
      %p213 = pneg %p212
      // Predicated region
      $region29: #{tpu_custom_call.1} parent=5 // pred_check
        _
      $region30: #{tpu_custom_call.1} parent=5 // pred_check_branch
        %215 = sbr.rel (%p212) target = $region32
      $region31: #{tpu_custom_call.1} parent=5 // pred_region
        %s216 = ssub.s32 %s16, 1
        // Predicated region
        $region33: #{tpu_custom_call.1} parent=31 // pred_check
          %p217 = pneg %p54
        $region34: #{tpu_custom_call.1} parent=31 // pred_check_branch
          %219 = sbr.rel (%p217) target = $region36
        $region35: #{tpu_custom_call.1} parent=31 // pred_region
          %220 = dma.done [#allocation4], 1024
        $region36: #{tpu_custom_call.1} parent=31 // pred_fallthru
          _
        %s221 = sand.u32 %s21, 1
        %s222 = scalar_lea.sflag [#allocation7], %s221
        %s223 = sand.u32 %s69, 1
        %s224 = smul.addr %s223, 2048
        %s225 = scalar_lea.vmem [#allocation6], %s224
        // Predicated region
        $region37: #{tpu_custom_call.1} parent=31 // pred_check
          %p226 = pneg %p82
        $region38: #{tpu_custom_call.1} parent=31 // pred_check_branch
          %228 = sbr.rel (%p226) target = $region40
        $region39: #{tpu_custom_call.1} parent=31 // pred_region
          %229 = dma.done %s222, 32768
        $region40: #{tpu_custom_call.1} parent=31 // pred_fallthru
          _
        %s230 = sand.u32 %s21, 1
        %s231 = scalar_lea.sflag [#allocation7], %s230
        %s232 = sand.u32 %s95, 1
        %s233 = smul.addr %s232, 2
        %s234 = scalar_lea.vmem [#allocation8], %s233
        // Predicated region
        $region41: #{tpu_custom_call.1} parent=31 // pred_check
          %p235 = pneg %p108
        $region42: #{tpu_custom_call.1} parent=31 // pred_check_branch
          %237 = sbr.rel (%p235) target = $region44
        $region43: #{tpu_custom_call.1} parent=31 // pred_region
          %238 = dma.done %s231, 32
        $region44: #{tpu_custom_call.1} parent=31 // pred_fallthru
          _
        %p239 = pneg %p54
        %p240 = pneg %p51
        %s241 = sand.u32 %s21, 1
        %s242 = scalar_lea.sflag [#allocation7], %s241
        %s243 = sand.u32 %s69, 1
        %s244 = smul.addr %s243, 2048
        %s245 = scalar_lea.vmem [#allocation6], %s244
        %p246 = pneg %p82
        %p247 = pneg %p79
        %s248 = sand.u32 %s21, 1
        %s249 = scalar_lea.sflag [#allocation7], %s248
        %s250 = sand.u32 %s95, 1
        %s251 = smul.addr %s250, 2
        %s252 = scalar_lea.vmem [#allocation8], %s251
        %p253 = pneg %p108
        %p254 = pneg %p105
        %p255 = pneg %p134
        %p256 = pneg %p131
        %s257 = sand.u32 %s121, 1
        %s258 = scalar_lea.sflag [#allocation5], %s257
        %s259 = sand.u32 %s121, 1
        %s260 = smul.addr %s259, 16
        %s261 = scalar_lea.vmem [#allocation9], %s260
        %s262 = smul.u32 8, %s26
        %s263 = smul.u32 128, %s26
        %s264 = smul.u32 2, %s25
        %s265 = smul.u32 2, %s25
        %s266 = smul.u32 2, %s25
        %p267 = scmp.eq.s32.totalorder %s26, 0
        // Predicated region
        $region45: #{tpu_custom_call.1} parent=31 // pred_check
          %p268 = pneg %p267
        $region46: #{tpu_custom_call.1} parent=31 // pred_check_branch
          %270 = sbr.rel (%p268) target = $region48
        $region47: #{tpu_custom_call.1} parent=31 // pred_region
          %271 = vst [vmem:[#allocation2] sm:$0xff] 0.0
          %272 = vst [vmem:[#allocation2 + $0x8] sm:$0xff] 0.0
        $region48: #{tpu_custom_call.1} parent=31 // pred_fallthru
          _
        %v273 = vld [vmem:[#allocation2] sm:$0xff]
        %v274 = vld [vmem:[#allocation2 + $0x8] sm:$0xff]
        %v275 = vld [vmem:[#allocation3] sm:$0xff]
        %v276 = vld [vmem:[#allocation3 + $0x8] sm:$0xff]
        %v277 = vld [vmem:[#allocation3 + $0x10] sm:$0xff]
        %v278 = vld [vmem:[#allocation3 + $0x18] sm:$0xff]
        %v279 = vld [vmem:[#allocation3 + $0x20] sm:$0xff]
        %v280 = vld [vmem:[#allocation3 + $0x28] sm:$0xff]
        %v281 = vld [vmem:[#allocation3 + $0x30] sm:$0xff]
        %v282 = vld [vmem:[#allocation3 + $0x38] sm:$0xff]
        %v283 = vld [vmem:[%s225] sm:$0xff]
        %v284 = vld [vmem:[%s225 + $0x8] sm:$0xff]
        %v285 = vld [vmem:[%s225 + $0x10] sm:$0xff]
        %v286 = vld [vmem:[%s225 + $0x18] sm:$0xff]
        %v287 = vld [vmem:[%s225 + $0x20] sm:$0xff]
        %v288 = vld [vmem:[%s225 + $0x28] sm:$0xff]
        %v289 = vld [vmem:[%s225 + $0x30] sm:$0xff]
        %v290 = vld [vmem:[%s225 + $0x38] sm:$0xff]
        %v291 = vld [vmem:[%s225 + $0x40] sm:$0xff]
        %v292 = vld [vmem:[%s225 + $0x48] sm:$0xff]
        %v293 = vld [vmem:[%s225 + $0x50] sm:$0xff]
        %v294 = vld [vmem:[%s225 + $0x58] sm:$0xff]
        %v295 = vld [vmem:[%s225 + $0x60] sm:$0xff]
        %v296 = vld [vmem:[%s225 + $0x68] sm:$0xff]
        %v297 = vld [vmem:[%s225 + $0x70] sm:$0xff]
        %v298 = vld [vmem:[%s225 + $0x78] sm:$0xff]
        %v299 = vld [vmem:[%s225 + $0x80] sm:$0xff]
        %v300 = vld [vmem:[%s225 + $0x88] sm:$0xff]
        %v301 = vld [vmem:[%s225 + $0x90] sm:$0xff]
        %v302 = vld [vmem:[%s225 + $0x98] sm:$0xff]
        %v303 = vld [vmem:[%s225 + $0xa0] sm:$0xff]
        %v304 = vld [vmem:[%s225 + $0xa8] sm:$0xff]
        %v305 = vld [vmem:[%s225 + $0xb0] sm:$0xff]
        %v306 = vld [vmem:[%s225 + $0xb8] sm:$0xff]
        %v307 = vld [vmem:[%s225 + $0xc0] sm:$0xff]
        %v308 = vld [vmem:[%s225 + $0xc8] sm:$0xff]
        %v309 = vld [vmem:[%s225 + $0xd0] sm:$0xff]
        %v310 = vld [vmem:[%s225 + $0xd8] sm:$0xff]
        %v311 = vld [vmem:[%s225 + $0xe0] sm:$0xff]
        %v312 = vld [vmem:[%s225 + $0xe8] sm:$0xff]
        %v313 = vld [vmem:[%s225 + $0xf0] sm:$0xff]
        %v314 = vld [vmem:[%s225 + $0xf8] sm:$0xff]
        %v315 = vld [vmem:[%s225 + $0x100] sm:$0xff]
        %v316 = vld [vmem:[%s225 + $0x108] sm:$0xff]
        %v317 = vld [vmem:[%s225 + $0x110] sm:$0xff]
        %v318 = vld [vmem:[%s225 + $0x118] sm:$0xff]
        %v319 = vld [vmem:[%s225 + $0x120] sm:$0xff]
        %v320 = vld [vmem:[%s225 + $0x128] sm:$0xff]
        %v321 = vld [vmem:[%s225 + $0x130] sm:$0xff]
        %v322 = vld [vmem:[%s225 + $0x138] sm:$0xff]
        %v323 = vld [vmem:[%s225 + $0x140] sm:$0xff]
        %v324 = vld [vmem:[%s225 + $0x148] sm:$0xff]
        %v325 = vld [vmem:[%s225 + $0x150] sm:$0xff]
        %v326 = vld [vmem:[%s225 + $0x158] sm:$0xff]
        %v327 = vld [vmem:[%s225 + $0x160] sm:$0xff]
        %v328 = vld [vmem:[%s225 + $0x168] sm:$0xff]
        %v329 = vld [vmem:[%s225 + $0x170] sm:$0xff]
        %v330 = vld [vmem:[%s225 + $0x178] sm:$0xff]
        %v331 = vld [vmem:[%s225 + $0x180] sm:$0xff]
        %v332 = vld [vmem:[%s225 + $0x188] sm:$0xff]
        %v333 = vld [vmem:[%s225 + $0x190] sm:$0xff]
        %v334 = vld [vmem:[%s225 + $0x198] sm:$0xff]
        %v335 = vld [vmem:[%s225 + $0x1a0] sm:$0xff]
        %v336 = vld [vmem:[%s225 + $0x1a8] sm:$0xff]
        %v337 = vld [vmem:[%s225 + $0x1b0] sm:$0xff]
        %v338 = vld [vmem:[%s225 + $0x1b8] sm:$0xff]
        %v339 = vld [vmem:[%s225 + $0x1c0] sm:$0xff]
        %v340 = vld [vmem:[%s225 + $0x1c8] sm:$0xff]
        %v341 = vld [vmem:[%s225 + $0x1d0] sm:$0xff]
        %v342 = vld [vmem:[%s225 + $0x1d8] sm:$0xff]
        %v343 = vld [vmem:[%s225 + $0x1e0] sm:$0xff]
        %v344 = vld [vmem:[%s225 + $0x1e8] sm:$0xff]
        %v345 = vld [vmem:[%s225 + $0x1f0] sm:$0xff]
        %v346 = vld [vmem:[%s225 + $0x1f8] sm:$0xff]
        %v347 = vld [vmem:[%s225 + $0x200] sm:$0xff]
        %v348 = vld [vmem:[%s225 + $0x208] sm:$0xff]
        %v349 = vld [vmem:[%s225 + $0x210] sm:$0xff]
        %v350 = vld [vmem:[%s225 + $0x218] sm:$0xff]
        %v351 = vld [vmem:[%s225 + $0x220] sm:$0xff]
        %v352 = vld [vmem:[%s225 + $0x228] sm:$0xff]
        %v353 = vld [vmem:[%s225 + $0x230] sm:$0xff]
        %v354 = vld [vmem:[%s225 + $0x238] sm:$0xff]
        %v355 = vld [vmem:[%s225 + $0x240] sm:$0xff]
        %v356 = vld [vmem:[%s225 + $0x248] sm:$0xff]
        %v357 = vld [vmem:[%s225 + $0x250] sm:$0xff]
        %v358 = vld [vmem:[%s225 + $0x258] sm:$0xff]
        %v359 = vld [vmem:[%s225 + $0x260] sm:$0xff]
        %v360 = vld [vmem:[%s225 + $0x268] sm:$0xff]
        %v361 = vld [vmem:[%s225 + $0x270] sm:$0xff]
        %v362 = vld [vmem:[%s225 + $0x278] sm:$0xff]
        %v363 = vld [vmem:[%s225 + $0x280] sm:$0xff]
        %v364 = vld [vmem:[%s225 + $0x288] sm:$0xff]
        %v365 = vld [vmem:[%s225 + $0x290] sm:$0xff]
        %v366 = vld [vmem:[%s225 + $0x298] sm:$0xff]
        %v367 = vld [vmem:[%s225 + $0x2a0] sm:$0xff]
        %v368 = vld [vmem:[%s225 + $0x2a8] sm:$0xff]
        %v369 = vld [vmem:[%s225 + $0x2b0] sm:$0xff]
        %v370 = vld [vmem:[%s225 + $0x2b8] sm:$0xff]
        %v371 = vld [vmem:[%s225 + $0x2c0] sm:$0xff]
        %v372 = vld [vmem:[%s225 + $0x2c8] sm:$0xff]
        %v373 = vld [vmem:[%s225 + $0x2d0] sm:$0xff]
        %v374 = vld [vmem:[%s225 + $0x2d8] sm:$0xff]
        %v375 = vld [vmem:[%s225 + $0x2e0] sm:$0xff]
        %v376 = vld [vmem:[%s225 + $0x2e8] sm:$0xff]
        %v377 = vld [vmem:[%s225 + $0x2f0] sm:$0xff]
        %v378 = vld [vmem:[%s225 + $0x2f8] sm:$0xff]
        %v379 = vld [vmem:[%s225 + $0x300] sm:$0xff]
        %v380 = vld [vmem:[%s225 + $0x308] sm:$0xff]
        %v381 = vld [vmem:[%s225 + $0x310] sm:$0xff]
        %v382 = vld [vmem:[%s225 + $0x318] sm:$0xff]
        %v383 = vld [vmem:[%s225 + $0x320] sm:$0xff]
        %v384 = vld [vmem:[%s225 + $0x328] sm:$0xff]
        %v385 = vld [vmem:[%s225 + $0x330] sm:$0xff]
        %v386 = vld [vmem:[%s225 + $0x338] sm:$0xff]
        %v387 = vld [vmem:[%s225 + $0x340] sm:$0xff]
        %v388 = vld [vmem:[%s225 + $0x348] sm:$0xff]
        %v389 = vld [vmem:[%s225 + $0x350] sm:$0xff]
        %v390 = vld [vmem:[%s225 + $0x358] sm:$0xff]
        %v391 = vld [vmem:[%s225 + $0x360] sm:$0xff]
        %v392 = vld [vmem:[%s225 + $0x368] sm:$0xff]
        %v393 = vld [vmem:[%s225 + $0x370] sm:$0xff]
        %v394 = vld [vmem:[%s225 + $0x378] sm:$0xff]
        %v395 = vld [vmem:[%s225 + $0x380] sm:$0xff]
        %v396 = vld [vmem:[%s225 + $0x388] sm:$0xff]
        %v397 = vld [vmem:[%s225 + $0x390] sm:$0xff]
        %v398 = vld [vmem:[%s225 + $0x398] sm:$0xff]
        %v399 = vld [vmem:[%s225 + $0x3a0] sm:$0xff]
        %v400 = vld [vmem:[%s225 + $0x3a8] sm:$0xff]
        %v401 = vld [vmem:[%s225 + $0x3b0] sm:$0xff]
        %v402 = vld [vmem:[%s225 + $0x3b8] sm:$0xff]
        %v403 = vld [vmem:[%s225 + $0x3c0] sm:$0xff]
        %v404 = vld [vmem:[%s225 + $0x3c8] sm:$0xff]
        %v405 = vld [vmem:[%s225 + $0x3d0] sm:$0xff]
        %v406 = vld [vmem:[%s225 + $0x3d8] sm:$0xff]
        %v407 = vld [vmem:[%s225 + $0x3e0] sm:$0xff]
        %v408 = vld [vmem:[%s225 + $0x3e8] sm:$0xff]
        %v409 = vld [vmem:[%s225 + $0x3f0] sm:$0xff]
        %v410 = vld [vmem:[%s225 + $0x3f8] sm:$0xff]
        %v411 = vld [vmem:[%s225 + $0x400] sm:$0xff]
        %v412 = vld [vmem:[%s225 + $0x408] sm:$0xff]
        %v413 = vld [vmem:[%s225 + $0x410] sm:$0xff]
        %v414 = vld [vmem:[%s225 + $0x418] sm:$0xff]
        %v415 = vld [vmem:[%s225 + $0x420] sm:$0xff]
        %v416 = vld [vmem:[%s225 + $0x428] sm:$0xff]
        %v417 = vld [vmem:[%s225 + $0x430] sm:$0xff]
        %v418 = vld [vmem:[%s225 + $0x438] sm:$0xff]
        %v419 = vld [vmem:[%s225 + $0x440] sm:$0xff]
        %v420 = vld [vmem:[%s225 + $0x448] sm:$0xff]
        %v421 = vld [vmem:[%s225 + $0x450] sm:$0xff]
        %v422 = vld [vmem:[%s225 + $0x458] sm:$0xff]
        %v423 = vld [vmem:[%s225 + $0x460] sm:$0xff]
        %v424 = vld [vmem:[%s225 + $0x468] sm:$0xff]
        %v425 = vld [vmem:[%s225 + $0x470] sm:$0xff]
        %v426 = vld [vmem:[%s225 + $0x478] sm:$0xff]
        %v427 = vld [vmem:[%s225 + $0x480] sm:$0xff]
        %v428 = vld [vmem:[%s225 + $0x488] sm:$0xff]
        %v429 = vld [vmem:[%s225 + $0x490] sm:$0xff]
        %v430 = vld [vmem:[%s225 + $0x498] sm:$0xff]
        %v431 = vld [vmem:[%s225 + $0x4a0] sm:$0xff]
        %v432 = vld [vmem:[%s225 + $0x4a8] sm:$0xff]
        %v433 = vld [vmem:[%s225 + $0x4b0] sm:$0xff]
        %v434 = vld [vmem:[%s225 + $0x4b8] sm:$0xff]
        %v435 = vld [vmem:[%s225 + $0x4c0] sm:$0xff]
        %v436 = vld [vmem:[%s225 + $0x4c8] sm:$0xff]
        %v437 = vld [vmem:[%s225 + $0x4d0] sm:$0xff]
        %v438 = vld [vmem:[%s225 + $0x4d8] sm:$0xff]
        %v439 = vld [vmem:[%s225 + $0x4e0] sm:$0xff]
        %v440 = vld [vmem:[%s225 + $0x4e8] sm:$0xff]
        %v441 = vld [vmem:[%s225 + $0x4f0] sm:$0xff]
        %v442 = vld [vmem:[%s225 + $0x4f8] sm:$0xff]
        %v443 = vld [vmem:[%s225 + $0x500] sm:$0xff]
        %v444 = vld [vmem:[%s225 + $0x508] sm:$0xff]
        %v445 = vld [vmem:[%s225 + $0x510] sm:$0xff]
        %v446 = vld [vmem:[%s225 + $0x518] sm:$0xff]
        %v447 = vld [vmem:[%s225 + $0x520] sm:$0xff]
        %v448 = vld [vmem:[%s225 + $0x528] sm:$0xff]
        %v449 = vld [vmem:[%s225 + $0x530] sm:$0xff]
        %v450 = vld [vmem:[%s225 + $0x538] sm:$0xff]
        %v451 = vld [vmem:[%s225 + $0x540] sm:$0xff]
        %v452 = vld [vmem:[%s225 + $0x548] sm:$0xff]
        %v453 = vld [vmem:[%s225 + $0x550] sm:$0xff]
        %v454 = vld [vmem:[%s225 + $0x558] sm:$0xff]
        %v455 = vld [vmem:[%s225 + $0x560] sm:$0xff]
        %v456 = vld [vmem:[%s225 + $0x568] sm:$0xff]
        %v457 = vld [vmem:[%s225 + $0x570] sm:$0xff]
        %v458 = vld [vmem:[%s225 + $0x578] sm:$0xff]
        %v459 = vld [vmem:[%s225 + $0x580] sm:$0xff]
        %v460 = vld [vmem:[%s225 + $0x588] sm:$0xff]
        %v461 = vld [vmem:[%s225 + $0x590] sm:$0xff]
        %v462 = vld [vmem:[%s225 + $0x598] sm:$0xff]
        %v463 = vld [vmem:[%s225 + $0x5a0] sm:$0xff]
        %v464 = vld [vmem:[%s225 + $0x5a8] sm:$0xff]
        %v465 = vld [vmem:[%s225 + $0x5b0] sm:$0xff]
        %v466 = vld [vmem:[%s225 + $0x5b8] sm:$0xff]
        %v467 = vld [vmem:[%s225 + $0x5c0] sm:$0xff]
        %v468 = vld [vmem:[%s225 + $0x5c8] sm:$0xff]
        %v469 = vld [vmem:[%s225 + $0x5d0] sm:$0xff]
        %v470 = vld [vmem:[%s225 + $0x5d8] sm:$0xff]
        %v471 = vld [vmem:[%s225 + $0x5e0] sm:$0xff]
        %v472 = vld [vmem:[%s225 + $0x5e8] sm:$0xff]
        %v473 = vld [vmem:[%s225 + $0x5f0] sm:$0xff]
        %v474 = vld [vmem:[%s225 + $0x5f8] sm:$0xff]
        %v475 = vld [vmem:[%s225 + $0x600] sm:$0xff]
        %v476 = vld [vmem:[%s225 + $0x608] sm:$0xff]
        %v477 = vld [vmem:[%s225 + $0x610] sm:$0xff]
        %v478 = vld [vmem:[%s225 + $0x618] sm:$0xff]
        %v479 = vld [vmem:[%s225 + $0x620] sm:$0xff]
        %v480 = vld [vmem:[%s225 + $0x628] sm:$0xff]
        %v481 = vld [vmem:[%s225 + $0x630] sm:$0xff]
        %v482 = vld [vmem:[%s225 + $0x638] sm:$0xff]
        %v483 = vld [vmem:[%s225 + $0x640] sm:$0xff]
        %v484 = vld [vmem:[%s225 + $0x648] sm:$0xff]
        %v485 = vld [vmem:[%s225 + $0x650] sm:$0xff]
        %v486 = vld [vmem:[%s225 + $0x658] sm:$0xff]
        %v487 = vld [vmem:[%s225 + $0x660] sm:$0xff]
        %v488 = vld [vmem:[%s225 + $0x668] sm:$0xff]
        %v489 = vld [vmem:[%s225 + $0x670] sm:$0xff]
        %v490 = vld [vmem:[%s225 + $0x678] sm:$0xff]
        %v491 = vld [vmem:[%s225 + $0x680] sm:$0xff]
        %v492 = vld [vmem:[%s225 + $0x688] sm:$0xff]
        %v493 = vld [vmem:[%s225 + $0x690] sm:$0xff]
        %v494 = vld [vmem:[%s225 + $0x698] sm:$0xff]
        %v495 = vld [vmem:[%s225 + $0x6a0] sm:$0xff]
        %v496 = vld [vmem:[%s225 + $0x6a8] sm:$0xff]
        %v497 = vld [vmem:[%s225 + $0x6b0] sm:$0xff]
        %v498 = vld [vmem:[%s225 + $0x6b8] sm:$0xff]
        %v499 = vld [vmem:[%s225 + $0x6c0] sm:$0xff]
        %v500 = vld [vmem:[%s225 + $0x6c8] sm:$0xff]
        %v501 = vld [vmem:[%s225 + $0x6d0] sm:$0xff]
        %v502 = vld [vmem:[%s225 + $0x6d8] sm:$0xff]
        %v503 = vld [vmem:[%s225 + $0x6e0] sm:$0xff]
        %v504 = vld [vmem:[%s225 + $0x6e8] sm:$0xff]
        %v505 = vld [vmem:[%s225 + $0x6f0] sm:$0xff]
        %v506 = vld [vmem:[%s225 + $0x6f8] sm:$0xff]
        %v507 = vld [vmem:[%s225 + $0x700] sm:$0xff]
        %v508 = vld [vmem:[%s225 + $0x708] sm:$0xff]
        %v509 = vld [vmem:[%s225 + $0x710] sm:$0xff]
        %v510 = vld [vmem:[%s225 + $0x718] sm:$0xff]
        %v511 = vld [vmem:[%s225 + $0x720] sm:$0xff]
        %v512 = vld [vmem:[%s225 + $0x728] sm:$0xff]
        %v513 = vld [vmem:[%s225 + $0x730] sm:$0xff]
        %v514 = vld [vmem:[%s225 + $0x738] sm:$0xff]
        %v515 = vld [vmem:[%s225 + $0x740] sm:$0xff]
        %v516 = vld [vmem:[%s225 + $0x748] sm:$0xff]
        %v517 = vld [vmem:[%s225 + $0x750] sm:$0xff]
        %v518 = vld [vmem:[%s225 + $0x758] sm:$0xff]
        %v519 = vld [vmem:[%s225 + $0x760] sm:$0xff]
        %v520 = vld [vmem:[%s225 + $0x768] sm:$0xff]
        %v521 = vld [vmem:[%s225 + $0x770] sm:$0xff]
        %v522 = vld [vmem:[%s225 + $0x778] sm:$0xff]
        %v523 = vld [vmem:[%s225 + $0x780] sm:$0xff]
        %v524 = vld [vmem:[%s225 + $0x788] sm:$0xff]
        %v525 = vld [vmem:[%s225 + $0x790] sm:$0xff]
        %v526 = vld [vmem:[%s225 + $0x798] sm:$0xff]
        %v527 = vld [vmem:[%s225 + $0x7a0] sm:$0xff]
        %v528 = vld [vmem:[%s225 + $0x7a8] sm:$0xff]
        %v529 = vld [vmem:[%s225 + $0x7b0] sm:$0xff]
        %v530 = vld [vmem:[%s225 + $0x7b8] sm:$0xff]
        %v531 = vld [vmem:[%s225 + $0x7c0] sm:$0xff]
        %v532 = vld [vmem:[%s225 + $0x7c8] sm:$0xff]
        %v533 = vld [vmem:[%s225 + $0x7d0] sm:$0xff]
        %v534 = vld [vmem:[%s225 + $0x7d8] sm:$0xff]
        %v535 = vld [vmem:[%s225 + $0x7e0] sm:$0xff]
        %v536 = vld [vmem:[%s225 + $0x7e8] sm:$0xff]
        %v537 = vld [vmem:[%s225 + $0x7f0] sm:$0xff]
        %v538 = vld [vmem:[%s225 + $0x7f8] sm:$0xff]
        %539 = vmatprep.subr.mxu0 %v314
        %540 = vmatpush1.msra.mxu0 %v313
        %541 = vmatprep.subr.mxu0 %v312
        %542 = vmatpush1.msra.mxu0 %v311
        %543 = vmatprep.subr.mxu0 %v310
        %544 = vmatpush1.msra.mxu0 %v309
        %545 = vmatprep.subr.mxu0 %v308
        %546 = vmatpush1.msra.mxu0 %v307
        %547 = vmatprep.subr.mxu0 %v306
        %548 = vmatpush1.msra.mxu0 %v305
        %549 = vmatprep.subr.mxu0 %v304
        %550 = vmatpush1.msra.mxu0 %v303
        %551 = vmatprep.subr.mxu0 %v302
        %552 = vmatpush1.msra.mxu0 %v301
        %553 = vmatprep.subr.mxu0 %v300
        %554 = vmatpush1.msra.mxu0 %v299
        %555 = vmatprep.subr.mxu0 %v298
        %556 = vmatpush1.msra.mxu0 %v297
        %557 = vmatprep.subr.mxu0 %v296
        %558 = vmatpush1.msra.mxu0 %v295
        %559 = vmatprep.subr.mxu0 %v294
        %560 = vmatpush1.msra.mxu0 %v293
        %561 = vmatprep.subr.mxu0 %v292
        %562 = vmatpush1.msra.mxu0 %v291
        %563 = vmatprep.subr.mxu0 %v290
        %564 = vmatpush1.msra.mxu0 %v289
        %565 = vmatprep.subr.mxu0 %v288
        %566 = vmatpush1.msra.mxu0 %v287
        %567 = vmatprep.subr.mxu0 %v286
        %568 = vmatpush1.msra.mxu0 %v285
        %569 = vmatprep.subr.mxu0 %v284
        %570 = vmatpush1.msra.mxu0 %v283
        %571 = vmatprep.subr.mxu0 %v346
        %572 = vmatpush2.msra.mxu0 %v345
        %573 = vmatprep.subr.mxu0 %v344
        %574 = vmatpush2.msra.mxu0 %v343
        %575 = vmatprep.subr.mxu0 %v342
        %576 = vmatpush2.msra.mxu0 %v341
        %577 = vmatprep.subr.mxu0 %v340
        %578 = vmatpush2.msra.mxu0 %v339
        %579 = vmatprep.subr.mxu0 %v338
        %580 = vmatpush2.msra.mxu0 %v337
        %581 = vmatprep.subr.mxu0 %v336
        %582 = vmatpush2.msra.mxu0 %v335
        %583 = vmatprep.subr.mxu0 %v334
        %584 = vmatpush2.msra.mxu0 %v333
        %585 = vmatprep.subr.mxu0 %v332
        %586 = vmatpush2.msra.mxu0 %v331
        %587 = vmatprep.subr.mxu0 %v330
        %588 = vmatpush2.msra.mxu0 %v329
        %589 = vmatprep.subr.mxu0 %v328
        %590 = vmatpush2.msra.mxu0 %v327
        %591 = vmatprep.subr.mxu0 %v326
        %592 = vmatpush2.msra.mxu0 %v325
        %593 = vmatprep.subr.mxu0 %v324
        %594 = vmatpush2.msra.mxu0 %v323
        %595 = vmatprep.subr.mxu0 %v322
        %596 = vmatpush2.msra.mxu0 %v321
        %597 = vmatprep.subr.mxu0 %v320
        %598 = vmatpush2.msra.mxu0 %v319
        %599 = vmatprep.subr.mxu0 %v318
        %600 = vmatpush2.msra.mxu0 %v317
        %601 = vmatprep.subr.mxu0 %v316
        %602 = vmatpush2.msra.mxu0 %v315
        %603 = vmatprep.mubr.f32.mxu0 %v276
        %604 = vmatmul.mubr.f32.gmra.mxu0 %v275
        %v605 = vpop.f32.mrf.mxu0
        %v606 = vadd.f32 0.0, %v605
        %v607 = vpop.f32.mrf.mxu0
        %v608 = vadd.f32 0.0, %v607
        %609 = vdwg.mxu0
        %610 = vmatprep.subr.mxu0 %v378
        %611 = vmatpush1.msra.mxu0 %v377
        %612 = vmatprep.subr.mxu0 %v376
        %613 = vmatpush1.msra.mxu0 %v375
        %614 = vmatprep.subr.mxu0 %v374
        %615 = vmatpush1.msra.mxu0 %v373
        %616 = vmatprep.subr.mxu0 %v372
        %617 = vmatpush1.msra.mxu0 %v371
        %618 = vmatprep.subr.mxu0 %v370
        %619 = vmatpush1.msra.mxu0 %v369
        %620 = vmatprep.subr.mxu0 %v368
        %621 = vmatpush1.msra.mxu0 %v367
        %622 = vmatprep.subr.mxu0 %v366
        %623 = vmatpush1.msra.mxu0 %v365
        %624 = vmatprep.subr.mxu0 %v364
        %625 = vmatpush1.msra.mxu0 %v363
        %626 = vmatprep.subr.mxu0 %v362
        %627 = vmatpush1.msra.mxu0 %v361
        %628 = vmatprep.subr.mxu0 %v360
        %629 = vmatpush1.msra.mxu0 %v359
        %630 = vmatprep.subr.mxu0 %v358
        %631 = vmatpush1.msra.mxu0 %v357
        %632 = vmatprep.subr.mxu0 %v356
        %633 = vmatpush1.msra.mxu0 %v355
        %634 = vmatprep.subr.mxu0 %v354
        %635 = vmatpush1.msra.mxu0 %v353
        %636 = vmatprep.subr.mxu0 %v352
        %637 = vmatpush1.msra.mxu0 %v351
        %638 = vmatprep.subr.mxu0 %v350
        %639 = vmatpush1.msra.mxu0 %v349
        %640 = vmatprep.subr.mxu0 %v348
        %641 = vmatpush1.msra.mxu0 %v347
        %642 = vmatprep.subr.mxu0 %v410
        %643 = vmatpush2.msra.mxu0 %v409
        %644 = vmatprep.subr.mxu0 %v408
        %645 = vmatpush2.msra.mxu0 %v407
        %646 = vmatprep.subr.mxu0 %v406
        %647 = vmatpush2.msra.mxu0 %v405
        %648 = vmatprep.subr.mxu0 %v404
        %649 = vmatpush2.msra.mxu0 %v403
        %650 = vmatprep.subr.mxu0 %v402
        %651 = vmatpush2.msra.mxu0 %v401
        %652 = vmatprep.subr.mxu0 %v400
        %653 = vmatpush2.msra.mxu0 %v399
        %654 = vmatprep.subr.mxu0 %v398
        %655 = vmatpush2.msra.mxu0 %v397
        %656 = vmatprep.subr.mxu0 %v396
        %657 = vmatpush2.msra.mxu0 %v395
        %658 = vmatprep.subr.mxu0 %v394
        %659 = vmatpush2.msra.mxu0 %v393
        %660 = vmatprep.subr.mxu0 %v392
        %661 = vmatpush2.msra.mxu0 %v391
        %662 = vmatprep.subr.mxu0 %v390
        %663 = vmatpush2.msra.mxu0 %v389
        %664 = vmatprep.subr.mxu0 %v388
        %665 = vmatpush2.msra.mxu0 %v387
        %666 = vmatprep.subr.mxu0 %v386
        %667 = vmatpush2.msra.mxu0 %v385
        %668 = vmatprep.subr.mxu0 %v384
        %669 = vmatpush2.msra.mxu0 %v383
        %670 = vmatprep.subr.mxu0 %v382
        %671 = vmatpush2.msra.mxu0 %v381
        %672 = vmatprep.subr.mxu0 %v380
        %673 = vmatpush2.msra.mxu0 %v379
        %674 = vmatprep.mubr.f32.mxu0 %v278
        %675 = vmatmul.mubr.f32.gmra.mxu0 %v277
        %v676 = vpop.f32.mrf.mxu0
        %v677 = vadd.f32 %v606, %v676
        %v678 = vpop.f32.mrf.mxu0
        %v679 = vadd.f32 %v608, %v678
        %680 = vdwg.mxu0
        %681 = vmatprep.subr.mxu0 %v442
        %682 = vmatpush1.msra.mxu0 %v441
        %683 = vmatprep.subr.mxu0 %v440
        %684 = vmatpush1.msra.mxu0 %v439
        %685 = vmatprep.subr.mxu0 %v438
        %686 = vmatpush1.msra.mxu0 %v437
        %687 = vmatprep.subr.mxu0 %v436
        %688 = vmatpush1.msra.mxu0 %v435
        %689 = vmatprep.subr.mxu0 %v434
        %690 = vmatpush1.msra.mxu0 %v433
        %691 = vmatprep.subr.mxu0 %v432
        %692 = vmatpush1.msra.mxu0 %v431
        %693 = vmatprep.subr.mxu0 %v430
        %694 = vmatpush1.msra.mxu0 %v429
        %695 = vmatprep.subr.mxu0 %v428
        %696 = vmatpush1.msra.mxu0 %v427
        %697 = vmatprep.subr.mxu0 %v426
        %698 = vmatpush1.msra.mxu0 %v425
        %699 = vmatprep.subr.mxu0 %v424
        %700 = vmatpush1.msra.mxu0 %v423
        %701 = vmatprep.subr.mxu0 %v422
        %702 = vmatpush1.msra.mxu0 %v421
        %703 = vmatprep.subr.mxu0 %v420
        %704 = vmatpush1.msra.mxu0 %v419
        %705 = vmatprep.subr.mxu0 %v418
        %706 = vmatpush1.msra.mxu0 %v417
        %707 = vmatprep.subr.mxu0 %v416
        %708 = vmatpush1.msra.mxu0 %v415
        %709 = vmatprep.subr.mxu0 %v414
        %710 = vmatpush1.msra.mxu0 %v413
        %711 = vmatprep.subr.mxu0 %v412
        %712 = vmatpush1.msra.mxu0 %v411
        %713 = vmatprep.subr.mxu0 %v474
        %714 = vmatpush2.msra.mxu0 %v473
        %715 = vmatprep.subr.mxu0 %v472
        %716 = vmatpush2.msra.mxu0 %v471
        %717 = vmatprep.subr.mxu0 %v470
        %718 = vmatpush2.msra.mxu0 %v469
        %719 = vmatprep.subr.mxu0 %v468
        %720 = vmatpush2.msra.mxu0 %v467
        %721 = vmatprep.subr.mxu0 %v466
        %722 = vmatpush2.msra.mxu0 %v465
        %723 = vmatprep.subr.mxu0 %v464
        %724 = vmatpush2.msra.mxu0 %v463
        %725 = vmatprep.subr.mxu0 %v462
        %726 = vmatpush2.msra.mxu0 %v461
        %727 = vmatprep.subr.mxu0 %v460
        %728 = vmatpush2.msra.mxu0 %v459
        %729 = vmatprep.subr.mxu0 %v458
        %730 = vmatpush2.msra.mxu0 %v457
        %731 = vmatprep.subr.mxu0 %v456
        %732 = vmatpush2.msra.mxu0 %v455
        %733 = vmatprep.subr.mxu0 %v454
        %734 = vmatpush2.msra.mxu0 %v453
        %735 = vmatprep.subr.mxu0 %v452
        %736 = vmatpush2.msra.mxu0 %v451
        %737 = vmatprep.subr.mxu0 %v450
        %738 = vmatpush2.msra.mxu0 %v449
        %739 = vmatprep.subr.mxu0 %v448
        %740 = vmatpush2.msra.mxu0 %v447
        %741 = vmatprep.subr.mxu0 %v446
        %742 = vmatpush2.msra.mxu0 %v445
        %743 = vmatprep.subr.mxu0 %v444
        %744 = vmatpush2.msra.mxu0 %v443
        %745 = vmatprep.mubr.f32.mxu0 %v280
        %746 = vmatmul.mubr.f32.gmra.mxu0 %v279
        %v747 = vpop.f32.mrf.mxu0
        %v748 = vadd.f32 %v677, %v747
        %v749 = vpop.f32.mrf.mxu0
        %v750 = vadd.f32 %v679, %v749
        %751 = vdwg.mxu0
        %752 = vmatprep.subr.mxu0 %v506
        %753 = vmatpush1.msra.mxu0 %v505
        %754 = vmatprep.subr.mxu0 %v504
        %755 = vmatpush1.msra.mxu0 %v503
        %756 = vmatprep.subr.mxu0 %v502
        %757 = vmatpush1.msra.mxu0 %v501
        %758 = vmatprep.subr.mxu0 %v500
        %759 = vmatpush1.msra.mxu0 %v499
        %760 = vmatprep.subr.mxu0 %v498
        %761 = vmatpush1.msra.mxu0 %v497
        %762 = vmatprep.subr.mxu0 %v496
        %763 = vmatpush1.msra.mxu0 %v495
        %764 = vmatprep.subr.mxu0 %v494
        %765 = vmatpush1.msra.mxu0 %v493
        %766 = vmatprep.subr.mxu0 %v492
        %767 = vmatpush1.msra.mxu0 %v491
        %768 = vmatprep.subr.mxu0 %v490
        %769 = vmatpush1.msra.mxu0 %v489
        %770 = vmatprep.subr.mxu0 %v488
        %771 = vmatpush1.msra.mxu0 %v487
        %772 = vmatprep.subr.mxu0 %v486
        %773 = vmatpush1.msra.mxu0 %v485
        %774 = vmatprep.subr.mxu0 %v484
        %775 = vmatpush1.msra.mxu0 %v483
        %776 = vmatprep.subr.mxu0 %v482
        %777 = vmatpush1.msra.mxu0 %v481
        %778 = vmatprep.subr.mxu0 %v480
        %779 = vmatpush1.msra.mxu0 %v479
        %780 = vmatprep.subr.mxu0 %v478
        %781 = vmatpush1.msra.mxu0 %v477
        %782 = vmatprep.subr.mxu0 %v476
        %783 = vmatpush1.msra.mxu0 %v475
        %784 = vmatprep.subr.mxu0 %v538
        %785 = vmatpush2.msra.mxu0 %v537
        %786 = vmatprep.subr.mxu0 %v536
        %787 = vmatpush2.msra.mxu0 %v535
        %788 = vmatprep.subr.mxu0 %v534
        %789 = vmatpush2.msra.mxu0 %v533
        %790 = vmatprep.subr.mxu0 %v532
        %791 = vmatpush2.msra.mxu0 %v531
        %792 = vmatprep.subr.mxu0 %v530
        %793 = vmatpush2.msra.mxu0 %v529
        %794 = vmatprep.subr.mxu0 %v528
        %795 = vmatpush2.msra.mxu0 %v527
        %796 = vmatprep.subr.mxu0 %v526
        %797 = vmatpush2.msra.mxu0 %v525
        %798 = vmatprep.subr.mxu0 %v524
        %799 = vmatpush2.msra.mxu0 %v523
        %800 = vmatprep.subr.mxu0 %v522
        %801 = vmatpush2.msra.mxu0 %v521
        %802 = vmatprep.subr.mxu0 %v520
        %803 = vmatpush2.msra.mxu0 %v519
        %804 = vmatprep.subr.mxu0 %v518
        %805 = vmatpush2.msra.mxu0 %v517
        %806 = vmatprep.subr.mxu0 %v516
        %807 = vmatpush2.msra.mxu0 %v515
        %808 = vmatprep.subr.mxu0 %v514
        %809 = vmatpush2.msra.mxu0 %v513
        %810 = vmatprep.subr.mxu0 %v512
        %811 = vmatpush2.msra.mxu0 %v511
        %812 = vmatprep.subr.mxu0 %v510
        %813 = vmatpush2.msra.mxu0 %v509
        %814 = vmatprep.subr.mxu0 %v508
        %815 = vmatpush2.msra.mxu0 %v507
        %816 = vmatprep.mubr.f32.mxu0 %v282
        %817 = vmatmul.mubr.f32.gmra.mxu0 %v281
        %v818 = vpop.f32.mrf.mxu0
        %v819 = vadd.f32 %v748, %v818
        %v820 = vpop.f32.mrf.mxu0
        %v821 = vadd.f32 %v750, %v820
        %822 = vdwg.mxu0
        %v823 = vadd.f32 %v273, %v819
        %v824 = vadd.f32 %v274, %v821
        %825 = vst [vmem:[#allocation2] sm:$0xff] %v823
        %826 = vst [vmem:[#allocation2 + $0x8] sm:$0xff] %v824
        // Predicated region
        $region49: #{tpu_custom_call.1} parent=31 // pred_check
          %p827 = pneg %p267
        $region50: #{tpu_custom_call.1} parent=31 // pred_check_branch
          %829 = sbr.rel (%p827) target = $region52
        $region51: #{tpu_custom_call.1} parent=31 // pred_region
          %v830 = vld [vmem:[#allocation2] sm:$0xff]
          %v831 = vld [vmem:[#allocation2 + $0x8] sm:$0xff]
          %v832 = vld [vmem:[%s234] sm:$0x3]
          %v834 = vlaneseq
          %v835 = vshrl.u32 %v834, 7
          %v836 = vsub.s32 0, %v835
          %v837 = vrot.slane %v832, %v836
          %v838 = vlaneseq
          %v839 = vshrl.u32 %v838, 7
          %v840 = vsub.s32 1, %v839
          %v841 = vrot.slane %v832, %v840
          %v844 = vadd.f32 %v830, %v837
          %v845 = vadd.f32 %v831, %v841
          %vm846 = vcmp.gt.f32.partialorder %v844, 0.0
          %vm847 = vcmp.gt.f32.partialorder %v845, 0.0
          %v848 = vmul.f32 %v844, 1.442695
          %v849 = vpow.pop %v848
          %v850 = vmul.f32 %v845, 1.442695
          %v851 = vpow.pop %v850
          %v852 = vsub.f32 %v849, 1.0
          %v853 = vsub.f32 %v851, 1.0
          %v854 = vsel %vm846, %v844, %v852
          %v855 = vsel %vm847, %v845, %v853
          %856 = vst [vmem:[%s261] sm:$0xff] %v854
          %857 = vst [vmem:[%s261 + $0x8] sm:$0xff] %v855
        $region52: #{tpu_custom_call.1} parent=31 // pred_fallthru
          _
        %s858 = sand.u32 %s121, 1
        %s859 = scalar_lea.sflag [#allocation5], %s858
        %s860 = sand.u32 %s121, 1
        %s861 = smul.addr %s860, 16
        %s862 = scalar_lea.vmem [#allocation9], %s861
        // Predicated region
        $region53: #{tpu_custom_call.1} parent=31 // pred_check
          %p863 = pneg %p131
        $region54: #{tpu_custom_call.1} parent=31 // pred_check_branch
          %865 = sbr.rel (%p863) target = $region56
        $region55: #{tpu_custom_call.1} parent=31 // pred_region
          %s866 = smul.u32 2, %s25
          %s868 = ssub.s32 256, 256
          %869 = vsyncadd %s859, %s868
          %s870 = smul.addr %s866, 128
          %s871 = scalar_lea.hbm %s3, %s870
          %s873 = sshll.u32 %s862, 4
          %s874 = int_to_ptr.vmem [resolvable:$true] %s873
          %876 = dma.vmem_to_hbm [thread:$0]  %s874, 256, %s871, %s859
        $region56: #{tpu_custom_call.1} parent=31 // pred_fallthru
          _
      $region32: #{tpu_custom_call.1} parent=5 // pred_fallthru
        _
      %p877 = scmp.le.s32.totalorder 2, %s16
      // Predicated region
      $region57: #{tpu_custom_call.1} parent=5 // pred_check
        %p878 = pneg %p877
      $region58: #{tpu_custom_call.1} parent=5 // pred_check_branch
        %880 = sbr.rel (%p878) target = $region60
      $region59: #{tpu_custom_call.1} parent=5 // pred_region
        %s881 = ssub.s32 %s16, 2
        // Predicated region
        $region61: #{tpu_custom_call.1} parent=59 // pred_check
          %p882 = pneg %p137
        $region62: #{tpu_custom_call.1} parent=59 // pred_check_branch
          %884 = sbr.rel (%p882) target = $region64
        $region63: #{tpu_custom_call.1} parent=59 // pred_region
          %s885 = sand.u32 %s122, 1
          %s886 = scalar_lea.sflag [#allocation5], %s885
          %s887 = sand.u32 %s122, 1
          %s888 = smul.addr %s887, 16
          %s889 = scalar_lea.vmem [#allocation9], %s888
          %890 = dma.done %s886, 256
        $region64: #{tpu_custom_call.1} parent=59 // pred_fallthru
          _
      $region60: #{tpu_custom_call.1} parent=5 // pred_fallthru
        _
    $region6: #{tpu_custom_call.1} parent=1 // loop_footer
      %s20 = sadd.s32 1, %s16
    $region7: #{tpu_custom_call.1} parent=1 // loop_footer_branch
      %15 = sbr.rel target = $region3
    $region8: #{tpu_custom_call.1} parent=1 // loop_exit
      _
    %891 = vsyncpa [#allocation4], 1
    %s892 = scalar_lea.sflag [#allocation4], 1
    %893 = vsyncpa %s892, 1
    %894 = vsyncpa [#allocation7], 1
    %s895 = scalar_lea.sflag [#allocation7], 1
    %896 = vsyncpa %s895, 1
    %897 = vsyncpa [#allocation5], 1
    %s898 = scalar_lea.sflag [#allocation5], 1
    %899 = vsyncpa %s898, 1

</llo_original>
